<compile_context>
chip_gen: v6e
topology: v6e:2x2x1
jax: 0.10.0
libtpu: 0.0.40
codegen_flags: <defaults>
</compile_context>

<pallas_src>
import functools

import jax
import jax.numpy as jnp
from jax.experimental import pallas as pl
from jax.experimental.pallas import tpu as pltpu


_LANE = 128
_BATCH_TILE = 8                      # query rows processed per kernel-2 grid step
_DEFAULT_VMEM_CAP = 64 * 1024 * 1024  # conservative physical-VMEM fallback (v7x)


def _vmem_budget_bytes():
    """Generation-aware scoped-VMEM budget (~3/4 of physical VMEM)."""
    try:
        cap = int(pltpu.get_tpu_info().vmem_capacity_bytes)
    except Exception:
        cap = _DEFAULT_VMEM_CAP
    return max(32 * 1024 * 1024, (cap * 3) // 4)


def _choose_row_tile(n, bytes_per_row, *, max_bytes=8 << 20, cap=1024, multiple=32):
    """Largest row tile that divides n, is a multiple of `multiple` (int8-layout
    friendly), keeps a (tm, n) A tile under max_bytes, and leaves >= 2 grid
    steps when possible so the 'parallel' axis can shard across v7x's 2 TCs.
    Falls back to tm == n (full-extent block: always a legal BlockSpec)."""
    limit = max(1, min(cap, n, max_bytes // max(1, bytes_per_row)))
    if n >= 2 * multiple:
        limit = min(limit, n // 2)
    for tm in range(limit, 0, -1):
        if n % tm == 0 and tm % multiple == 0:
            return tm
    return n


# --------------------------------------------------------------------------
# Kernel 1: batch-independent first-hop features X (N, D)
# --------------------------------------------------------------------------
def _first_hop_kernel(a_ref, inv_ref, e_ref, w1e_ref, w1h_ref, b1_ref,
                      w2_ref, b2_ref, x_ref, *, tm):
    # 2nd-hop mean aggregation: H = (A01[rows] @ E) * inv_deg[rows]
    a = a_ref[...].astype(jnp.bfloat16)                                  # (tm, N)
    h = jnp.dot(a, e_ref[...], preferred_element_type=jnp.float32)      # (tm, D) f32
    h = h * inv_ref[...]                                                 # f32 row scale

    # Self features: slice the rows from the already-resident E (no dup stream).
    row0 = pl.multiple_of(pl.program_id(0) * tm, 8)
    e_rows = e_ref[pl.ds(row0, tm), :]                                   # (tm, D) bf16

    # relu(W1 @ [E ; H]) via the split-dot identity (no concat / relayout).
    z1 = (jnp.dot(e_rows, w1e_ref[...], preferred_element_type=jnp.float32)
          + jnp.dot(h.astype(jnp.bfloat16), w1h_ref[...],
                    preferred_element_type=jnp.float32)
          + b1_ref[...])
    z1 = jnp.maximum(z1, 0.0).astype(jnp.bfloat16)                       # (tm, D)

    # relu(W2 @ .)
    x = jnp.dot(z1, w2_ref[...], preferred_element_type=jnp.float32) + b2_ref[...]
    x_ref[...] = jnp.maximum(x, 0.0).astype(x_ref.dtype)                 # (tm, D) bf16


def _compute_first_hop_feats(a01_i8, inv_deg, e_bf16, w1e, w1h, b1r, w2t, b2r):
    n, d = e_bf16.shape
    tm = _choose_row_tile(n, bytes_per_row=n)          # int8 A: 1 byte / element
    kernel = functools.partial(_first_hop_kernel, tm=tm)
    return pl.pallas_call(
        kernel,
        grid_spec=pltpu.PrefetchScalarGridSpec(
            num_scalar_prefetch=0,
            grid=(n // tm,),
            in_specs=[
                pl.BlockSpec((tm, n), lambda i: (i, 0)),     # A01 row block (int8 stream)
                pl.BlockSpec((tm, 1), lambda i: (i, 0)),     # 1/deg row block (f32)
                pl.BlockSpec((n, d), lambda i: (0, 0)),      # E (bf16, VMEM resident)
                pl.BlockSpec((d, d), lambda i: (0, 0)),      # W1^T self half
                pl.BlockSpec((d, d), lambda i: (0, 0)),      # W1^T agg half
                pl.BlockSpec((1, d), lambda i: (0, 0)),      # b1 (f32)
                pl.BlockSpec((d, d), lambda i: (0, 0)),      # W2^T
                pl.BlockSpec((1, d), lambda i: (0, 0)),      # b2 (f32)
            ],
            out_specs=pl.BlockSpec((tm, d), lambda i: (i, 0)),
        ),
        out_shape=jax.ShapeDtypeStruct((n, d), jnp.bfloat16),
        compiler_params=pltpu.CompilerParams(
            dimension_semantics=("parallel",),               # row blocks independent
            vmem_limit_bytes=_vmem_budget_bytes(),
        ),
    )(a01_i8, inv_deg, e_bf16, w1e, w1h, b1r, w2t, b2r)


# --------------------------------------------------------------------------
# Kernel 2: per-batch parent aggregation + final layer (8 rows per grid step)
# --------------------------------------------------------------------------
def _batch_kernel(a_ref, inv_ref, s_ref, x_ref, wcs_ref, wcp_ref, bc_ref, out_ref):
    # P = (A01[nodes] @ X) * inv_deg[nodes]   (exact mean over first neighbors)
    p = jnp.dot(a_ref[...], x_ref[...], preferred_element_type=jnp.float32)
    p = p * inv_ref[...]                                                 # (tb, D) f32
    # relu(Wc @ [UV ; P]) via split-dot; output lane-padded to 128 for dense vst.
    out = (jnp.dot(s_ref[...], wcs_ref[...], preferred_element_type=jnp.float32)
           + jnp.dot(p.astype(jnp.bfloat16), wcp_ref[...],
                     preferred_element_type=jnp.float32)
           + bc_ref[...])
    out_ref[...] = jnp.maximum(out, 0.0)


def _batch_update(a_rows, inv_rows, uv_rows, x_bf16, wcs, wcp, bcp):
    b_pad, n = a_rows.shape
    d = x_bf16.shape[1]
    dp = wcs.shape[1]
    tb = _BATCH_TILE
    return pl.pallas_call(
        _batch_kernel,
        grid_spec=pltpu.PrefetchScalarGridSpec(
            num_scalar_prefetch=0,
            grid=(b_pad // tb,),
            in_specs=[
                pl.BlockSpec((tb, n), lambda i: (i, 0)),     # gathered A rows (bf16 {0,1})
                pl.BlockSpec((tb, 1), lambda i: (i, 0)),     # gathered 1/deg (f32)
                pl.BlockSpec((tb, d), lambda i: (i, 0)),     # gathered UV rows (bf16)
                pl.BlockSpec((n, d), lambda i: (0, 0)),      # X (VMEM resident)
                pl.BlockSpec((d, dp), lambda i: (0, 0)),     # Wc^T self half (lane-padded)
                pl.BlockSpec((d, dp), lambda i: (0, 0)),     # Wc^T agg half (lane-padded)
                pl.BlockSpec((1, dp), lambda i: (0, 0)),     # bc (lane-padded, f32)
            ],
            out_specs=pl.BlockSpec((tb, dp), lambda i: (i, 0)),
        ),
        out_shape=jax.ShapeDtypeStruct((b_pad, dp), jnp.float32),
        compiler_params=pltpu.CompilerParams(
            dimension_semantics=("parallel",),
            vmem_limit_bytes=_vmem_budget_bytes(),
        ),
    )(a_rows, inv_rows, uv_rows, x_bf16, wcs, wcp, bcp)


# --------------------------------------------------------------------------
# One-time (outside-jit) prep: hoist every dtype cast / weight transform
# --------------------------------------------------------------------------
def prepare_inputs(adj01, user_emb, uv_emb, params):
    W1, b1, W2, b2, Wc, bc = params
    d = user_emb.shape[1]
    dp = ((d + _LANE - 1) // _LANE) * _LANE          # lane-pad final output width

    deg = adj01.astype(jnp.float32).sum(axis=1, keepdims=True)
    inv_deg = 1.0 / jnp.maximum(deg, 1.0)            # (N, 1) f32 exact row scale

    w1t = W1.T.astype(jnp.bfloat16)                  # (2D, D)
    wct = jnp.zeros((2 * d, dp), jnp.bfloat16).at[:, :d].set(Wc.T.astype(jnp.bfloat16))
    bcp = jnp.zeros((1, dp), jnp.float32).at[:, :d].set(bc.astype(jnp.float32))

    return dict(
        a01_i8=adj01.astype(jnp.int8),               # {0,1}: half the HBM bytes of bf16
        inv_deg=inv_deg,
        e_bf16=user_emb.astype(jnp.bfloat16),
        uv_bf16=uv_emb.astype(jnp.bfloat16),
        w1e=w1t[:d], w1h=w1t[d:],
        b1r=b1[None, :].astype(jnp.float32),
        w2t=W2.T.astype(jnp.bfloat16),
        b2r=b2[None, :].astype(jnp.float32),
        wcs=wct[:d], wcp=wct[d:], bcp=bcp,
    )


# --------------------------------------------------------------------------
# Forward wrapper
# --------------------------------------------------------------------------
@jax.jit
def user_user_updater_forward(nodes, a01_i8, inv_deg, e_bf16, uv_bf16,
                              w1e, w1h, b1r, w2t, b2r, wcs, wcp, bcp):
    n, d = e_bf16.shape
    b = nodes.shape[0]

    # Batch-independent first-hop features (hoisted out of the per-batch path).
    x_bf16 = _compute_first_hop_feats(a01_i8, inv_deg, e_bf16,
                                      w1e, w1h, b1r, w2t, b2r)           # (N, D)

    # Pad B to a multiple of 8 so kernel 2 runs sublane-dense 8-row blocks.
    b_pad = ((b + _BATCH_TILE - 1) // _BATCH_TILE) * _BATCH_TILE
    nodes_pad = jnp.pad(nodes, (0, b_pad - b)) if b_pad != b else nodes

    # Wrapper-side gather of the (B_pad, N) adjacency slab + UV / 1/deg rows.
    a_rows = jnp.take(a01_i8, nodes_pad, axis=0).astype(jnp.bfloat16)    # exact {0,1}
    inv_rows = jnp.take(inv_deg, nodes_pad, axis=0)
    uv_rows = jnp.take(uv_bf16, nodes_pad, axis=0)

    out_pad = _batch_update(a_rows, inv_rows, uv_rows, x_bf16, wcs, wcp, bcp)
    return out_pad[:b, :d]                                               # (B, D) f32


def _reference(nodes, a_norm, user_emb, uv_emb, params):
    """Pure-JAX f32 reference of the same math (sanity check)."""
    W1, b1, W2, b2, Wc, bc = params
    H = a_norm @ user_emb
    Z1 = jax.nn.relu(jnp.concatenate([user_emb, H], axis=1) @ W1.T + b1)
    X = jax.nn.relu(Z1 @ W2.T + b2)
    P = a_norm[nodes] @ X
    S = uv_emb[nodes]
    return jax.nn.relu(jnp.concatenate([S, P], axis=1) @ Wc.T + bc)


if __name__ == "__main__":
    N_USERS = 64          # total users in the social graph
    D = 32                # embedding_dim
    B = 8                 # batch of query nodes
    K = 4                 # neighbors per user (deterministic ring graph)

    key = jax.random.PRNGKey(0)
    k_e, k_uv, k_w1, k_w2, k_wc, k_b1, k_b2, k_bc = jax.random.split(key, 8)

    # deterministic ring adjacency: user u -> {u+1, ..., u+K} (mod N)
    rows = jnp.arange(N_USERS)[:, None]
    cols = (rows + jnp.arange(1, K + 1)[None, :]) % N_USERS
    adj01 = jnp.zeros((N_USERS, N_USERS), jnp.float32).at[
        jnp.repeat(rows, K, axis=1).reshape(-1), cols.reshape(-1)].set(1.0)
    a_norm = adj01 / jnp.maximum(adj01.sum(axis=1, keepdims=True), 1.0)

    # embedding tables (user_embeddings.weight and uv_updated_features)
    user_emb = jax.random.normal(k_e, (N_USERS, D), jnp.float32) * 0.1
    uv_emb = jax.random.normal(k_uv, (N_USERS, D), jnp.float32) * 0.1

    # linear layer parameters (deterministic init)
    scale = 1.0 / jnp.sqrt(jnp.float32(2 * D))
    W1 = jax.random.normal(k_w1, (D, 2 * D), jnp.float32) * scale
    W2 = jax.random.normal(k_w2, (D, D), jnp.float32) * (1.0 / jnp.sqrt(jnp.float32(D)))
    Wc = jax.random.normal(k_wc, (D, 2 * D), jnp.float32) * scale
    b1 = jax.random.normal(k_b1, (D,), jnp.float32) * 0.01
    b2 = jax.random.normal(k_b2, (D,), jnp.float32) * 0.01
    bc = jax.random.normal(k_bc, (D,), jnp.float32) * 0.01
    params = (W1, b1, W2, b2, Wc, bc)

    nodes = jnp.arange(B, dtype=jnp.int32) * 3 % N_USERS   # batch of query user ids

    prep = prepare_inputs(adj01, user_emb, uv_emb, params)  # one-time, outside jit
    out = user_user_updater_forward(
        nodes, prep["a01_i8"], prep["inv_deg"], prep["e_bf16"], prep["uv_bf16"],
        prep["w1e"], prep["w1h"], prep["b1r"], prep["w2t"], prep["b2r"],
        prep["wcs"], prep["wcp"], prep["bcp"])
    out = jax.block_until_ready(out)

    ref = _reference(nodes, a_norm, user_emb, uv_emb, params)
    assert out.shape == (B, D)
    # bf16 MXU inputs vs f32 reference -> loosened tolerance
    assert jnp.allclose(out, ref, atol=2e-2, rtol=2e-2), "mismatch vs JAX reference"

    print("KERNEL_OK")
</pallas_src>

<mosaic_0001>
module attributes {stable_mosaic.version = 11 : i64} {
  func.func @_batch_kernel(%arg0: i32, %arg1: memref<8x64xbf16, #tpu.memory_space<vmem>>, %arg2: memref<8x1xf32, #tpu.memory_space<vmem>>, %arg3: memref<8x32xbf16, #tpu.memory_space<vmem>>, %arg4: memref<64x32xbf16, #tpu.memory_space<vmem>>, %arg5: memref<32x128xbf16, #tpu.memory_space<vmem>>, %arg6: memref<32x128xbf16, #tpu.memory_space<vmem>>, %arg7: memref<1x128xf32, #tpu.memory_space<vmem>>, %arg8: memref<8x128xf32, #tpu.memory_space<vmem>>) attributes {dimension_semantics = [#tpu.dimension_semantics<parallel>], iteration_bounds = array<i64: 1>, scalar_prefetch = 0 : i64, scratch_operands = 0 : i64, tpu.core_type = #tpu.core_type<tc>, window_params = [{transform_indices = @transform_0, window_bounds = array<i64: 8, 64>}, {transform_indices = @transform_1, window_bounds = array<i64: 8, 1>}, {transform_indices = @transform_2, window_bounds = array<i64: 8, 32>}, {pipeline_mode = #tpu.pipeline_mode<synchronous>, transform_indices = @transform_3, window_bounds = array<i64: 64, 32>}, {pipeline_mode = #tpu.pipeline_mode<synchronous>, transform_indices = @transform_4, window_bounds = array<i64: 32, 128>}, {pipeline_mode = #tpu.pipeline_mode<synchronous>, transform_indices = @transform_5, window_bounds = array<i64: 32, 128>}, {pipeline_mode = #tpu.pipeline_mode<synchronous>, transform_indices = @transform_6, window_bounds = array<i64: 1, 128>}, {transform_indices = @transform_7, window_bounds = array<i64: 8, 128>}]} {
    %c0 = arith.constant 0 : index
    %c0_0 = arith.constant 0 : index
    %0 = vector.load %arg1[%c0, %c0_0] : memref<8x64xbf16, #tpu.memory_space<vmem>>, vector<8x64xbf16>
    %c0_1 = arith.constant 0 : index
    %c0_2 = arith.constant 0 : index
    %1 = vector.load %arg4[%c0_1, %c0_2] : memref<64x32xbf16, #tpu.memory_space<vmem>>, vector<64x32xbf16>
    %cst = arith.constant dense<0.000000e+00> : vector<8x32xf32>
    %2 = tpu.matmul %0, %1, %cst {dimension_numbers = #tpu.dot_dimension_numbers<[1], [0], [0], [1], [0, 0, 1, 1], [], []>} : vector<8x64xbf16>, vector<64x32xbf16>, vector<8x32xf32> -> vector<8x32xf32>
    %c0_3 = arith.constant 0 : index
    %c0_4 = arith.constant 0 : index
    %3 = vector.load %arg2[%c0_3, %c0_4] : memref<8x1xf32, #tpu.memory_space<vmem>>, vector<8x1xf32>
    %4 = vector.broadcast %3 : vector<8x1xf32> to vector<8x32xf32>
    %5 = arith.mulf %2, %4 : vector<8x32xf32>
    %c0_5 = arith.constant 0 : index
    %c0_6 = arith.constant 0 : index
    %6 = vector.load %arg3[%c0_5, %c0_6] : memref<8x32xbf16, #tpu.memory_space<vmem>>, vector<8x32xbf16>
    %c0_7 = arith.constant 0 : index
    %c0_8 = arith.constant 0 : index
    %7 = vector.load %arg5[%c0_7, %c0_8] : memref<32x128xbf16, #tpu.memory_space<vmem>>, vector<32x128xbf16>
    %cst_9 = arith.constant dense<0.000000e+00> : vector<8x128xf32>
    %8 = tpu.matmul %6, %7, %cst_9 {dimension_numbers = #tpu.dot_dimension_numbers<[1], [0], [0], [1], [0, 0, 1, 1], [], []>} : vector<8x32xbf16>, vector<32x128xbf16>, vector<8x128xf32> -> vector<8x128xf32>
    %9 = arith.truncf %5 : vector<8x32xf32> to vector<8x32xbf16>
    %c0_10 = arith.constant 0 : index
    %c0_11 = arith.constant 0 : index
    %10 = vector.load %arg6[%c0_10, %c0_11] : memref<32x128xbf16, #tpu.memory_space<vmem>>, vector<32x128xbf16>
    %cst_12 = arith.constant dense<0.000000e+00> : vector<8x128xf32>
    %11 = tpu.matmul %9, %10, %cst_12 {dimension_numbers = #tpu.dot_dimension_numbers<[1], [0], [0], [1], [0, 0, 1, 1], [], []>} : vector<8x32xbf16>, vector<32x128xbf16>, vector<8x128xf32> -> vector<8x128xf32>
    %12 = arith.addf %8, %11 : vector<8x128xf32>
    %c0_13 = arith.constant 0 : index
    %c0_14 = arith.constant 0 : index
    %13 = vector.load %arg7[%c0_13, %c0_14] : memref<1x128xf32, #tpu.memory_space<vmem>>, vector<1x128xf32>
    %14 = vector.broadcast %13 : vector<1x128xf32> to vector<8x128xf32>
    %15 = arith.addf %12, %14 : vector<8x128xf32>
    %cst_15 = arith.constant 0.000000e+00 : f32
    %16 = vector.broadcast %cst_15 : f32 to vector<8x128xf32>
    %17 = arith.maximumf %15, %16 : vector<8x128xf32>
    %c0_16 = arith.constant 0 : index
    %c0_17 = arith.constant 0 : index
    %18 = vector.load %arg8[%c0_16, %c0_17] : memref<8x128xf32, #tpu.memory_space<vmem>>, vector<8x128xf32>
    tpu.vector_store %arg8[%c0_16, %c0_17], %17 {strides = array<i32>} : memref<8x128xf32, #tpu.memory_space<vmem>>, vector<8x128xf32>,
    return
  }
  func.func @transform_0(%arg0: i32) -> (i32, i32) {
    %c0_i32 = arith.constant 0 : i32
    %c0_i32_0 = arith.constant 0 : i32
    return %arg0, %c0_i32 : i32, i32
  }
  func.func @transform_1(%arg0: i32) -> (i32, i32) {
    %c0_i32 = arith.constant 0 : i32
    %c0_i32_0 = arith.constant 0 : i32
    return %arg0, %c0_i32 : i32, i32
  }
  func.func @transform_2(%arg0: i32) -> (i32, i32) {
    %c0_i32 = arith.constant 0 : i32
    %c0_i32_0 = arith.constant 0 : i32
    return %arg0, %c0_i32 : i32, i32
  }
  func.func @transform_3(%arg0: i32) -> (i32, i32) {
    %c0_i32 = arith.constant 0 : i32
    %c0_i32_0 = arith.constant 0 : i32
    %c0_i32_1 = arith.constant 0 : i32
    return %c0_i32, %c0_i32_0 : i32, i32
  }
  func.func @transform_4(%arg0: i32) -> (i32, i32) {
    %c0_i32 = arith.constant 0 : i32
    %c0_i32_0 = arith.constant 0 : i32
    %c0_i32_1 = arith.constant 0 : i32
    return %c0_i32, %c0_i32_0 : i32, i32
  }
  func.func @transform_5(%arg0: i32) -> (i32, i32) {
    %c0_i32 = arith.constant 0 : i32
    %c0_i32_0 = arith.constant 0 : i32
    %c0_i32_1 = arith.constant 0 : i32
    return %c0_i32, %c0_i32_0 : i32, i32
  }
  func.func @transform_6(%arg0: i32) -> (i32, i32) {
    %c0_i32 = arith.constant 0 : i32
    %c0_i32_0 = arith.constant 0 : i32
    %c0_i32_1 = arith.constant 0 : i32
    return %c0_i32, %c0_i32_0 : i32, i32
  }
  func.func @transform_7(%arg0: i32) -> (i32, i32) {
    %c0_i32 = arith.constant 0 : i32
    %c0_i32_0 = arith.constant 0 : i32
    return %arg0, %c0_i32 : i32, i32
  }
}

module attributes {stable_mosaic.version = 11 : i64} {
  func.func @_first_hop_kernel(%arg0: i32, %arg1: memref<32x64xi8, #tpu.memory_space<vmem>>, %arg2: memref<32x1xf32, #tpu.memory_space<vmem>>, %arg3: memref<64x32xbf16, #tpu.memory_space<vmem>>, %arg4: memref<32x32xbf16, #tpu.memory_space<vmem>>, %arg5: memref<32x32xbf16, #tpu.memory_space<vmem>>, %arg6: memref<1x32xf32, #tpu.memory_space<vmem>>, %arg7: memref<32x32xbf16, #tpu.memory_space<vmem>>, %arg8: memref<1x32xf32, #tpu.memory_space<vmem>>, %arg9: memref<32x32xbf16, #tpu.memory_space<vmem>>) attributes {dimension_semantics = [#tpu.dimension_semantics<parallel>], iteration_bounds = array<i64: 2>, scalar_prefetch = 0 : i64, scratch_operands = 0 : i64, tpu.core_type = #tpu.core_type<tc>, window_params = [{transform_indices = @transform_0, window_bounds = array<i64: 32, 64>}, {transform_indices = @transform_1, window_bounds = array<i64: 32, 1>}, {pipeline_mode = #tpu.pipeline_mode<synchronous>, transform_indices = @transform_2, window_bounds = array<i64: 64, 32>}, {pipeline_mode = #tpu.pipeline_mode<synchronous>, transform_indices = @transform_3, window_bounds = array<i64: 32, 32>}, {pipeline_mode = #tpu.pipeline_mode<synchronous>, transform_indices = @transform_4, window_bounds = array<i64: 32, 32>}, {pipeline_mode = #tpu.pipeline_mode<synchronous>, transform_indices = @transform_5, window_bounds = array<i64: 1, 32>}, {pipeline_mode = #tpu.pipeline_mode<synchronous>, transform_indices = @transform_6, window_bounds = array<i64: 32, 32>}, {pipeline_mode = #tpu.pipeline_mode<synchronous>, transform_indices = @transform_7, window_bounds = array<i64: 1, 32>}, {transform_indices = @transform_8, window_bounds = array<i64: 32, 32>}]} {
    %c0 = arith.constant 0 : index
    %c0_0 = arith.constant 0 : index
    %0 = vector.load %arg1[%c0, %c0_0] : memref<32x64xi8, #tpu.memory_space<vmem>>, vector<32x64xi8>
    %1 = arith.sitofp %0 : vector<32x64xi8> to vector<32x64xbf16>
    %c0_1 = arith.constant 0 : index
    %c0_2 = arith.constant 0 : index
    %2 = vector.load %arg3[%c0_1, %c0_2] : memref<64x32xbf16, #tpu.memory_space<vmem>>, vector<64x32xbf16>
    %cst = arith.constant dense<0.000000e+00> : vector<32x32xf32>
    %3 = tpu.matmul %1, %2, %cst {dimension_numbers = #tpu.dot_dimension_numbers<[1], [0], [0], [1], [0, 0, 1, 1], [], []>} : vector<32x64xbf16>, vector<64x32xbf16>, vector<32x32xf32> -> vector<32x32xf32>
    %c0_3 = arith.constant 0 : index
    %c0_4 = arith.constant 0 : index
    %4 = vector.load %arg2[%c0_3, %c0_4] : memref<32x1xf32, #tpu.memory_space<vmem>>, vector<32x1xf32>
    %5 = vector.broadcast %4 : vector<32x1xf32> to vector<32x32xf32>
    %6 = arith.mulf %3, %5 : vector<32x32xf32>
    %c32_i32 = arith.constant 32 : i32
    %7 = arith.muli %arg0, %c32_i32 : i32
    %8 = tpu.assume_multiple %7, 8 : i32
    %9 = arith.index_cast %8 : i32 to index
    %c0_5 = arith.constant 0 : index
    %10 = vector.load %arg3[%9, %c0_5] : memref<64x32xbf16, #tpu.memory_space<vmem>>, vector<32x32xbf16>
    %c0_6 = arith.constant 0 : index
    %c0_7 = arith.constant 0 : index
    %11 = vector.load %arg4[%c0_6, %c0_7] : memref<32x32xbf16, #tpu.memory_space<vmem>>, vector<32x32xbf16>
    %cst_8 = arith.constant dense<0.000000e+00> : vector<32x32xf32>
    %12 = tpu.matmul %10, %11, %cst_8 {dimension_numbers = #tpu.dot_dimension_numbers<[1], [0], [0], [1], [0, 0, 1, 1], [], []>} : vector<32x32xbf16>, vector<32x32xbf16>, vector<32x32xf32> -> vector<32x32xf32>
    %13 = arith.truncf %6 : vector<32x32xf32> to vector<32x32xbf16>
    %c0_9 = arith.constant 0 : index
    %c0_10 = arith.constant 0 : index
    %14 = vector.load %arg5[%c0_9, %c0_10] : memref<32x32xbf16, #tpu.memory_space<vmem>>, vector<32x32xbf16>
    %cst_11 = arith.constant dense<0.000000e+00> : vector<32x32xf32>
    %15 = tpu.matmul %13, %14, %cst_11 {dimension_numbers = #tpu.dot_dimension_numbers<[1], [0], [0], [1], [0, 0, 1, 1], [], []>} : vector<32x32xbf16>, vector<32x32xbf16>, vector<32x32xf32> -> vector<32x32xf32>
    %16 = arith.addf %12, %15 : vector<32x32xf32>
    %c0_12 = arith.constant 0 : index
    %c0_13 = arith.constant 0 : index
    %17 = vector.load %arg6[%c0_12, %c0_13] : memref<1x32xf32, #tpu.memory_space<vmem>>, vector<1x32xf32>
    %18 = vector.broadcast %17 : vector<1x32xf32> to vector<32x32xf32>
    %19 = arith.addf %16, %18 : vector<32x32xf32>
    %cst_14 = arith.constant 0.000000e+00 : f32
    %20 = vector.broadcast %cst_14 : f32 to vector<32x32xf32>
    %21 = arith.maximumf %19, %20 : vector<32x32xf32>
    %22 = arith.truncf %21 : vector<32x32xf32> to vector<32x32xbf16>
    %c0_15 = arith.constant 0 : index
    %c0_16 = arith.constant 0 : index
    %23 = vector.load %arg7[%c0_15, %c0_16] : memref<32x32xbf16, #tpu.memory_space<vmem>>, vector<32x32xbf16>
    %cst_17 = arith.constant dense<0.000000e+00> : vector<32x32xf32>
    %24 = tpu.matmul %22, %23, %cst_17 {dimension_numbers = #tpu.dot_dimension_numbers<[1], [0], [0], [1], [0, 0, 1, 1], [], []>} : vector<32x32xbf16>, vector<32x32xbf16>, vector<32x32xf32> -> vector<32x32xf32>
    %c0_18 = arith.constant 0 : index
    %c0_19 = arith.constant 0 : index
    %25 = vector.load %arg8[%c0_18, %c0_19] : memref<1x32xf32, #tpu.memory_space<vmem>>, vector<1x32xf32>
    %26 = vector.broadcast %25 : vector<1x32xf32> to vector<32x32xf32>
    %27 = arith.addf %24, %26 : vector<32x32xf32>
    %cst_20 = arith.constant 0.000000e+00 : f32
    %28 = vector.broadcast %cst_20 : f32 to vector<32x32xf32>
    %29 = arith.maximumf %27, %28 : vector<32x32xf32>
    %30 = arith.truncf %29 : vector<32x32xf32> to vector<32x32xbf16>
    %c0_21 = arith.constant 0 : index
    %c0_22 = arith.constant 0 : index
    %31 = vector.load %arg9[%c0_21, %c0_22] : memref<32x32xbf16, #tpu.memory_space<vmem>>, vector<32x32xbf16>
    tpu.vector_store %arg9[%c0_21, %c0_22], %30 {strides = array<i32>} : memref<32x32xbf16, #tpu.memory_space<vmem>>, vector<32x32xbf16>,
    return
  }
  func.func @transform_0(%arg0: i32) -> (i32, i32) {
    %c0_i32 = arith.constant 0 : i32
    %c0_i32_0 = arith.constant 0 : i32
    return %arg0, %c0_i32 : i32, i32
  }
  func.func @transform_1(%arg0: i32) -> (i32, i32) {
    %c0_i32 = arith.constant 0 : i32
    %c0_i32_0 = arith.constant 0 : i32
    return %arg0, %c0_i32 : i32, i32
  }
  func.func @transform_2(%arg0: i32) -> (i32, i32) {
    %c0_i32 = arith.constant 0 : i32
    %c0_i32_0 = arith.constant 0 : i32
    %c0_i32_1 = arith.constant 0 : i32
    return %c0_i32, %c0_i32_0 : i32, i32
  }
  func.func @transform_3(%arg0: i32) -> (i32, i32) {
    %c0_i32 = arith.constant 0 : i32
    %c0_i32_0 = arith.constant 0 : i32
    %c0_i32_1 = arith.constant 0 : i32
    return %c0_i32, %c0_i32_0 : i32, i32
  }
  func.func @transform_4(%arg0: i32) -> (i32, i32) {
    %c0_i32 = arith.constant 0 : i32
    %c0_i32_0 = arith.constant 0 : i32
    %c0_i32_1 = arith.constant 0 : i32
    return %c0_i32, %c0_i32_0 : i32, i32
  }
  func.func @transform_5(%arg0: i32) -> (i32, i32) {
    %c0_i32 = arith.constant 0 : i32
    %c0_i32_0 = arith.constant 0 : i32
    %c0_i32_1 = arith.constant 0 : i32
    return %c0_i32, %c0_i32_0 : i32, i32
  }
  func.func @transform_6(%arg0: i32) -> (i32, i32) {
    %c0_i32 = arith.constant 0 : i32
    %c0_i32_0 = arith.constant 0 : i32
    %c0_i32_1 = arith.constant 0 : i32
    return %c0_i32, %c0_i32_0 : i32, i32
  }
  func.func @transform_7(%arg0: i32) -> (i32, i32) {
    %c0_i32 = arith.constant 0 : i32
    %c0_i32_0 = arith.constant 0 : i32
    %c0_i32_1 = arith.constant 0 : i32
    return %c0_i32, %c0_i32_0 : i32, i32
  }
  func.func @transform_8(%arg0: i32) -> (i32, i32) {
    %c0_i32 = arith.constant 0 : i32
    %c0_i32_0 = arith.constant 0 : i32
    return %arg0, %c0_i32 : i32, i32
  }
}

</mosaic_0001>

<llo_original>
// kernel: user_user_updater_forward.3
$region0: #{user_user_updater_forward.3}
  #allocation0 [shape = 'u32[]', space=smem, size = 0x4, offset = 0x4, fixed_abs, tag = 'smem constant byte address 0x4 - core index']
  #allocation1 [shape = 'u32[144,128]{1,0:T(1,128)}', space=vmem, size = 0x12000, scoped, tag = 'internal scratch']
  %s0 = inlined_call_operand.vmem [shape: bf16[8,64], index: 0, kind: input, shape index: {}]
  %s1 = inlined_call_operand.vmem [shape: f32[8,1], index: 1, kind: input, shape index: {}]
  %s2 = inlined_call_operand.vmem [shape: bf16[8,32], index: 2, kind: input, shape index: {}]
  %s3 = inlined_call_operand.vmem [shape: bf16[64,32], index: 3, kind: input, shape index: {}]
  %s4 = inlined_call_operand.vmem [shape: bf16[32,128], index: 4, kind: input, shape index: {}]
  %s5 = inlined_call_operand.vmem [shape: bf16[32,128], index: 5, kind: input, shape index: {}]
  %s6 = inlined_call_operand.vmem [shape: f32[1,128], index: 6, kind: input, shape index: {}]
  %s7 = inlined_call_operand.hbm [shape: f32[8,128], index: 7, kind: output, shape index: {}]
  %s8 = sld [smem:[#allocation0]]
  $region38: #{user_user_updater_forward.3} parent=0
    _
  %s10 = ssub.s32 1, %s8
  %s11 = scalar_select 0, %s10, %s8
  $region1: #{user_user_updater_forward.3} parent=0
    #allocation2 [shape = 'u8[4096]{0}', space=vmem, size = 0x1000, scoped, tag = 'output window, operand 0, single buffered']
    #allocation3 [shape = 's32[1]{0}', space=sflag, size = 0x4, scoped, tag = 'scoped memory for user_user_updater_forward.3']
    %12 = vsyncpa [#allocation3], 0
    // Predicated region
    $region2: #{user_user_updater_forward.3} parent=1 // pred_check
      _
    $region3: #{user_user_updater_forward.3} parent=1 // pred_check_branch
      %14 = sbr.rel (0) target = $region5
    $region4: #{user_user_updater_forward.3} parent=1 // pred_region
      _
    $region5: #{user_user_updater_forward.3} parent=1 // pred_fallthru
      _
    // Predicated region
    $region6: #{user_user_updater_forward.3} parent=1 // pred_check
      _
    $region7: #{user_user_updater_forward.3} parent=1 // pred_check_branch
      %16 = sbr.rel (0) target = $region9
    $region8: #{user_user_updater_forward.3} parent=1 // pred_region
      _
    $region9: #{user_user_updater_forward.3} parent=1 // pred_fallthru
      _
    // Predicated region
    $region10: #{user_user_updater_forward.3} parent=1 // pred_check
      _
    $region11: #{user_user_updater_forward.3} parent=1 // pred_check_branch
      %18 = sbr.rel (0) target = $region13
    $region12: #{user_user_updater_forward.3} parent=1 // pred_region
      _
    $region13: #{user_user_updater_forward.3} parent=1 // pred_fallthru
      _
    // Predicated region
    $region14: #{user_user_updater_forward.3} parent=1 // pred_check
      _
    $region15: #{user_user_updater_forward.3} parent=1 // pred_check_branch
      %20 = sbr.rel (0) target = $region17
    $region16: #{user_user_updater_forward.3} parent=1 // pred_region
      _
    $region17: #{user_user_updater_forward.3} parent=1 // pred_fallthru
      _
    // Predicated region
    $region18: #{user_user_updater_forward.3} parent=1 // pred_check
      _
    $region19: #{user_user_updater_forward.3} parent=1 // pred_check_branch
      %22 = sbr.rel (0) target = $region21
    $region20: #{user_user_updater_forward.3} parent=1 // pred_region
      _
    $region21: #{user_user_updater_forward.3} parent=1 // pred_fallthru
      _
    // Predicated region
    $region22: #{user_user_updater_forward.3} parent=1 // pred_check
      _
    $region23: #{user_user_updater_forward.3} parent=1 // pred_check_branch
      %24 = sbr.rel (0) target = $region25
    $region24: #{user_user_updater_forward.3} parent=1 // pred_region
      _
    $region25: #{user_user_updater_forward.3} parent=1 // pred_fallthru
      _
    // Predicated region
    $region26: #{user_user_updater_forward.3} parent=1 // pred_check
      _
    $region27: #{user_user_updater_forward.3} parent=1 // pred_check_branch
      %26 = sbr.rel (0) target = $region29
    $region28: #{user_user_updater_forward.3} parent=1 // pred_region
      _
    $region29: #{user_user_updater_forward.3} parent=1 // pred_fallthru
      _
    %v28 = vld [vmem:[%s0] sm:$0xf]
    %v29 = vld [vmem:[%s3] sm:$0xf]
    %v30 = vld [vmem:[%s3 + $0x4] sm:$0xf]
    %v31 = vld [vmem:[%s3 + $0x8] sm:$0xf]
    %v32 = vld [vmem:[%s3 + $0xc] sm:$0xf]
    %v33 = vld [vmem:[%s3 + $0x10] sm:$0xf]
    %v34 = vld [vmem:[%s3 + $0x14] sm:$0xf]
    %v35 = vld [vmem:[%s3 + $0x18] sm:$0xf]
    %v36 = vld [vmem:[%s3 + $0x1c] sm:$0xf]
    %v45 = vunpack.c.l.b16 %v29
    %v46 = vunpack.c.l.b16 %v30
    %v47 = vunpack.c.l.b16 %v31
    %v48 = vunpack.c.l.b16 %v32
    %v49 = vunpack.c.l.b16 %v33
    %v50 = vunpack.c.l.b16 %v34
    %v51 = vunpack.c.l.b16 %v35
    %v52 = vunpack.c.l.b16 %v36
    %v53 = vpack.c.b16 %v46, %v45
    %v54 = vpack.c.b16 %v48, %v47
    %v55 = vpack.c.b16 %v50, %v49
    %v56 = vpack.c.b16 %v52, %v51
    %vm61 = vcmask 523264
    %v63 = vsel %vm61, %v28, 0
    %65 = vmatprep.subr.bf16.mxu0 0
    %66 = vmatpush1.bf16.msra.mxu0 0
    %67 = vmatprep.subr.bf16.mxu0 0
    %68 = vmatpush1.bf16.msra.mxu0 0
    %69 = vmatprep.subr.bf16.mxu0 0
    %70 = vmatpush1.bf16.msra.mxu0 0
    %71 = vmatprep.subr.bf16.mxu0 0
    %72 = vmatpush1.bf16.msra.mxu0 0
    %73 = vmatprep.subr.bf16.mxu0 0
    %74 = vmatpush1.bf16.msra.mxu0 %v56
    %75 = vmatprep.subr.bf16.mxu0 0
    %76 = vmatpush1.bf16.msra.mxu0 %v55
    %77 = vmatprep.subr.bf16.mxu0 0
    %78 = vmatpush1.bf16.msra.mxu0 %v54
    %79 = vmatprep.subr.bf16.mxu0 0
    %80 = vmatpush1.bf16.msra.mxu0 %v53
    %81 = vmatprep.subr.bf16.mxu0 0
    %82 = vmatpush2.bf16.msra.mxu0 0
    %83 = vmatprep.subr.bf16.mxu0 0
    %84 = vmatpush2.bf16.msra.mxu0 0
    %85 = vmatprep.subr.bf16.mxu0 0
    %86 = vmatpush2.bf16.msra.mxu0 0
    %87 = vmatprep.subr.bf16.mxu0 0
    %88 = vmatpush2.bf16.msra.mxu0 0
    %89 = vmatprep.subr.bf16.mxu0 0
    %90 = vmatpush2.bf16.msra.mxu0 0
    %91 = vmatprep.subr.bf16.mxu0 0
    %92 = vmatpush2.bf16.msra.mxu0 0
    %93 = vmatprep.subr.bf16.mxu0 0
    %94 = vmatpush2.bf16.msra.mxu0 0
    %95 = vmatprep.subr.bf16.mxu0 0
    %96 = vmatpush2.bf16.msra.mxu0 0
    %97 = vmatprep.mubr.bf16.mxu0 0
    %98 = vmatmul.mubr.bf16.gmra.mxu0 %v63
    %v99 = vpop.f32.mrf.mxu0
    %v100 = vadd.f32 0.0, %v99
    %v101 = vpop.f32.mrf.mxu0
    %v102 = vpop.f32.mrf.mxu0
    %v103 = vpop.f32.mrf.mxu0
    %104 = vdwg.mxu0
    %v105 = vld [vmem:[%s1] sm:$0xff]
    %107 = vset.pattern.permute.xlu0 0
    %108 = vperm.xlu0 %107, %v105
    %v109 = vpop.permute.xlu0 %108
    %v111 = vmul.f32 %v100, %v109
    %v112 = vld [vmem:[%s2] sm:$0xf]
    %v113 = vld [vmem:[%s4] sm:$0xf]
    %v114 = vld [vmem:[%s4 + $0x4] sm:$0xf]
    %v115 = vld [vmem:[%s4 + $0x8] sm:$0xf]
    %v116 = vld [vmem:[%s4 + $0xc] sm:$0xf]
    %v117 = vpack.c.bf16 %v111, %v111
    %v118 = vld [vmem:[%s5] sm:$0xf]
    %v119 = vld [vmem:[%s5 + $0x4] sm:$0xf]
    %v120 = vld [vmem:[%s5 + $0x8] sm:$0xf]
    %v121 = vld [vmem:[%s5 + $0xc] sm:$0xf]
    %v126 = vunpack.c.l.b16 %v118
    %v127 = vunpack.c.l.b16 %v119
    %v128 = vunpack.c.l.b16 %v120
    %v129 = vunpack.c.l.b16 %v121
    %v130 = vpack.c.b16 %v127, %v126
    %v131 = vpack.c.b16 %v129, %v128
    %vm134 = vcmask 261120
    %v136 = vsel %vm134, %v117, 0
    %138 = vmatprep.subr.bf16.mxu0 0
    %139 = vmatpush1.bf16.msra.mxu0 0
    %140 = vmatprep.subr.bf16.mxu0 0
    %141 = vmatpush1.bf16.msra.mxu0 0
    %142 = vmatprep.subr.bf16.mxu0 0
    %143 = vmatpush1.bf16.msra.mxu0 0
    %144 = vmatprep.subr.bf16.mxu0 0
    %145 = vmatpush1.bf16.msra.mxu0 0
    %146 = vmatprep.subr.bf16.mxu0 0
    %147 = vmatpush1.bf16.msra.mxu0 0
    %148 = vmatprep.subr.bf16.mxu0 0
    %149 = vmatpush1.bf16.msra.mxu0 0
    %150 = vmatprep.subr.bf16.mxu0 0
    %151 = vmatpush1.bf16.msra.mxu0 %v131
    %152 = vmatprep.subr.bf16.mxu0 0
    %153 = vmatpush1.bf16.msra.mxu0 %v130
    %154 = vmatprep.subr.bf16.mxu0 0
    %155 = vmatpush2.bf16.msra.mxu0 0
    %156 = vmatprep.subr.bf16.mxu0 0
    %157 = vmatpush2.bf16.msra.mxu0 0
    %158 = vmatprep.subr.bf16.mxu0 0
    %159 = vmatpush2.bf16.msra.mxu0 0
    %160 = vmatprep.subr.bf16.mxu0 0
    %161 = vmatpush2.bf16.msra.mxu0 0
    %162 = vmatprep.subr.bf16.mxu0 0
    %163 = vmatpush2.bf16.msra.mxu0 0
    %164 = vmatprep.subr.bf16.mxu0 0
    %165 = vmatpush2.bf16.msra.mxu0 0
    %166 = vmatprep.subr.bf16.mxu0 0
    %167 = vmatpush2.bf16.msra.mxu0 0
    %168 = vmatprep.subr.bf16.mxu0 0
    %169 = vmatpush2.bf16.msra.mxu0 0
    %170 = vmatprep.mubr.bf16.mxu0 0
    %171 = vmatmul.mubr.bf16.gmra.mxu0 %v136
    %v172 = vpop.f32.mrf.mxu0
    %v173 = vadd.f32 0.0, %v172
    %v174 = vpop.f32.mrf.mxu0
    %v175 = vpop.f32.mrf.mxu0
    %v176 = vpop.f32.mrf.mxu0
    %177 = vdwg.mxu0
    %v182 = vunpack.c.l.b16 %v113
    %v183 = vunpack.c.l.b16 %v114
    %v184 = vunpack.c.l.b16 %v115
    %v185 = vunpack.c.l.b16 %v116
    %v186 = vpack.c.b16 %v183, %v182
    %v187 = vpack.c.b16 %v185, %v184
    %v191 = vsel %vm134, %v112, 0
    %193 = vmatprep.subr.bf16.mxu0 0
    %194 = vmatpush1.bf16.msra.mxu0 0
    %195 = vmatprep.subr.bf16.mxu0 0
    %196 = vmatpush1.bf16.msra.mxu0 0
    %197 = vmatprep.subr.bf16.mxu0 0
    %198 = vmatpush1.bf16.msra.mxu0 0
    %199 = vmatprep.subr.bf16.mxu0 0
    %200 = vmatpush1.bf16.msra.mxu0 0
    %201 = vmatprep.subr.bf16.mxu0 0
    %202 = vmatpush1.bf16.msra.mxu0 0
    %203 = vmatprep.subr.bf16.mxu0 0
    %204 = vmatpush1.bf16.msra.mxu0 0
    %205 = vmatprep.subr.bf16.mxu0 0
    %206 = vmatpush1.bf16.msra.mxu0 %v187
    %207 = vmatprep.subr.bf16.mxu0 0
    %208 = vmatpush1.bf16.msra.mxu0 %v186
    %209 = vmatprep.subr.bf16.mxu0 0
    %210 = vmatpush2.bf16.msra.mxu0 0
    %211 = vmatprep.subr.bf16.mxu0 0
    %212 = vmatpush2.bf16.msra.mxu0 0
    %213 = vmatprep.subr.bf16.mxu0 0
    %214 = vmatpush2.bf16.msra.mxu0 0
    %215 = vmatprep.subr.bf16.mxu0 0
    %216 = vmatpush2.bf16.msra.mxu0 0
    %217 = vmatprep.subr.bf16.mxu0 0
    %218 = vmatpush2.bf16.msra.mxu0 0
    %219 = vmatprep.subr.bf16.mxu0 0
    %220 = vmatpush2.bf16.msra.mxu0 0
    %221 = vmatprep.subr.bf16.mxu0 0
    %222 = vmatpush2.bf16.msra.mxu0 0
    %223 = vmatprep.subr.bf16.mxu0 0
    %224 = vmatpush2.bf16.msra.mxu0 0
    %225 = vmatprep.mubr.bf16.mxu0 0
    %226 = vmatmul.mubr.bf16.gmra.mxu0 %v191
    %v227 = vpop.f32.mrf.mxu0
    %v228 = vadd.f32 %v173, %v227
    %v229 = vpop.f32.mrf.mxu0
    %v230 = vpop.f32.mrf.mxu0
    %v231 = vpop.f32.mrf.mxu0
    %232 = vdwg.mxu0
    %v233 = vld [vmem:[%s6] sm:$0x1]
    %v235 = vlaneseq
    %v236 = vshrl.u32 %v235, 7
    %v237 = vsub.s32 0, %v236
    %v238 = vrot.slane %v233, %v237
    %v240 = vadd.f32 %v228, %v238
    %v241 = vmax.f32 %v240, 0.0
    %242 = vst [vmem:[#allocation2] sm:$0xff] %v241
    // Predicated region
    $region30: #{user_user_updater_forward.3} parent=1 // pred_check
      _
    $region31: #{user_user_updater_forward.3} parent=1 // pred_check_branch
      %244 = sbr.rel (0) target = $region33
    $region32: #{user_user_updater_forward.3} parent=1 // pred_region
      %s246 = ssub.s32 128, 128
      %247 = vsyncadd [#allocation3], %s246
      %s249 = sshll.u32 [#allocation2], 4
      %s250 = int_to_ptr.vmem [resolvable:$true] %s249
      %252 = dma.vmem_to_hbm [thread:$0]  %s250, 128, %s7, [#allocation3]
    $region33: #{user_user_updater_forward.3} parent=1 // pred_fallthru
      _
    // Predicated region
    $region34: #{user_user_updater_forward.3} parent=1 // pred_check
      _
    $region35: #{user_user_updater_forward.3} parent=1 // pred_check_branch
      %254 = sbr.rel (0) target = $region37
    $region36: #{user_user_updater_forward.3} parent=1 // pred_region
      %255 = dma.done [#allocation3], 128
    $region37: #{user_user_updater_forward.3} parent=1 // pred_fallthru
      _
    %256 = vsyncpa [#allocation3], 1

// kernel: user_user_updater_forward.2
$region0: #{user_user_updater_forward.2}
  #allocation0 [shape = 'u32[]', space=smem, size = 0x4, offset = 0x4, fixed_abs, tag = 'smem constant byte address 0x4 - core index']
  #allocation1 [shape = 'u32[144,128]{1,0:T(1,128)}', space=vmem, size = 0x12000, scoped, tag = 'internal scratch']
  %s0 = inlined_call_operand.vmem [shape: s8[64,64], index: 0, kind: input, shape index: {}]
  %s1 = inlined_call_operand.vmem [shape: f32[64,1], index: 1, kind: input, shape index: {}]
  %s2 = inlined_call_operand.vmem [shape: bf16[64,32], index: 2, kind: input, shape index: {}]
  %s3 = inlined_call_operand.vmem [shape: bf16[32,32], index: 3, kind: input, shape index: {}]
  %s4 = inlined_call_operand.vmem [shape: bf16[32,32], index: 4, kind: input, shape index: {}]
  %s5 = inlined_call_operand.vmem [shape: f32[1,32], index: 5, kind: input, shape index: {}]
  %s6 = inlined_call_operand.vmem [shape: bf16[32,32], index: 6, kind: input, shape index: {}]
  %s7 = inlined_call_operand.vmem [shape: f32[1,32], index: 7, kind: input, shape index: {}]
  %s8 = inlined_call_operand.vmem [shape: bf16[64,32], index: 8, kind: output, shape index: {}]
  %s9 = sld [smem:[#allocation0]]
  $region65: #{user_user_updater_forward.2} parent=0
    _
  %s11 = ssub.s32 1, %s9
  %s12 = scalar_select 0, %s11, %s9
  loop: start=0, step=1, limit=4
  $region2: #{user_user_updater_forward.2} parent=0 // loop_pre_header
    _
  $region3: #{user_user_updater_forward.2} parent=0 // loop_header
    %s14 = sphi 0, %s18
    %p15 = scmp.ge.s32.totalorder %s14, 4
    %s24 = sphi 0, %s26
    %s27 = sphi 0, %s24
    %s28 = sphi 0, %s27
    %s44 = sphi 0, %s28
    %s50 = sphi 0, %s52
    %s53 = sphi 0, %s50
    %s54 = sphi 0, %s53
    %s70 = sphi 0, %s54
    %s74 = sphi 0, %s74
    %s76 = sphi 0, %s74
    %s77 = sphi 0, %s76
    %s91 = sphi 0, %s77
    %s95 = sphi 0, %s95
    %s97 = sphi 0, %s95
    %s98 = sphi 0, %s97
    %s112 = sphi 0, %s98
    %s116 = sphi 0, %s116
    %s118 = sphi 0, %s116
    %s119 = sphi 0, %s118
    %s133 = sphi 0, %s119
    %s137 = sphi 0, %s137
    %s139 = sphi 0, %s137
    %s140 = sphi 0, %s139
    %s154 = sphi 0, %s140
    %s158 = sphi 0, %s158
    %s160 = sphi 0, %s158
    %s161 = sphi 0, %s160
    %s175 = sphi 0, %s161
    %s179 = sphi 0, %s179
    %s181 = sphi 0, %s179
    %s182 = sphi 0, %s181
    %s196 = sphi 0, %s182
    %s202 = sphi 0, %s204
    %s205 = sphi 0, %s202
    %s206 = sphi 0, %s205
    %s222 = sphi 0, %s206
  $region4: #{user_user_updater_forward.2} parent=0 // loop_header_branch
    %17 = sbr.rel (%p15) target = $region8
  $region5: #{user_user_updater_forward.2} parent=0 // loop_body
    %s19 = ssub.s32 %s14, 1
    %s20 = ssub.s32 %s14, 2
    %s21 = sadd.s32 %s14, 1
    %s22 = ssub.s32 %s14, %s21
    %p23 = scmp.eq.s32.totalorder %s22, 0
    %s25 = sadd.s32 %s24, 1
    %s26 = scalar_select %p23, %s24, %s25
    %p29 = pneg %p23
    %p30 = scmp.eq.s32.totalorder %s14, 1
    %p31 = por %p29, %p30
    %p32 = scmp.ne.s32.totalorder %s24, %s27
    %p33 = scmp.eq.s32.totalorder %s14, 0
    %p34 = por %p32, %p33
    %p35 = scmp.ne.s32.totalorder %s24, %s27
    %p36 = scmp.eq.s32.totalorder %s19, 1
    %p37 = por %p35, %p36
    %p38 = scmp.ne.s32.totalorder %s27, %s28
    %p39 = scmp.eq.s32.totalorder %s19, 0
    %p40 = por %p38, %p39
    %p41 = scmp.ne.s32.totalorder %s27, %s28
    %p42 = scmp.eq.s32.totalorder %s20, 1
    %p43 = por %p41, %p42
    %p45 = scmp.ne.s32.totalorder %s28, %s44
    %p46 = scmp.eq.s32.totalorder %s20, 0
    %p47 = por %p45, %p46
    %s48 = ssub.s32 %s14, %s21
    %p49 = scmp.eq.s32.totalorder %s48, 0
    %s51 = sadd.s32 %s50, 1
    %s52 = scalar_select %p49, %s50, %s51
    %p55 = pneg %p49
    %p56 = scmp.eq.s32.totalorder %s14, 1
    %p57 = por %p55, %p56
    %p58 = scmp.ne.s32.totalorder %s50, %s53
    %p59 = scmp.eq.s32.totalorder %s14, 0
    %p60 = por %p58, %p59
    %p61 = scmp.ne.s32.totalorder %s50, %s53
    %p62 = scmp.eq.s32.totalorder %s19, 1
    %p63 = por %p61, %p62
    %p64 = scmp.ne.s32.totalorder %s53, %s54
    %p65 = scmp.eq.s32.totalorder %s19, 0
    %p66 = por %p64, %p65
    %p67 = scmp.ne.s32.totalorder %s53, %s54
    %p68 = scmp.eq.s32.totalorder %s20, 1
    %p69 = por %p67, %p68
    %p71 = scmp.ne.s32.totalorder %s54, %s70
    %p72 = scmp.eq.s32.totalorder %s20, 0
    %p73 = por %p71, %p72
    %s75 = sadd.s32 %s74, 1
    %p78 = scmp.eq.s32.totalorder %s14, 1
    %p79 = scmp.ne.s32.totalorder %s74, %s76
    %p80 = scmp.eq.s32.totalorder %s14, 0
    %p81 = por %p79, %p80
    %p82 = scmp.ne.s32.totalorder %s74, %s76
    %p83 = scmp.eq.s32.totalorder %s19, 1
    %p84 = por %p82, %p83
    %p85 = scmp.ne.s32.totalorder %s76, %s77
    %p86 = scmp.eq.s32.totalorder %s19, 0
    %p87 = por %p85, %p86
    %p88 = scmp.ne.s32.totalorder %s76, %s77
    %p89 = scmp.eq.s32.totalorder %s20, 1
    %p90 = por %p88, %p89
    %p92 = scmp.ne.s32.totalorder %s77, %s91
    %p93 = scmp.eq.s32.totalorder %s20, 0
    %p94 = por %p92, %p93
    %s96 = sadd.s32 %s95, 1
    %p99 = scmp.eq.s32.totalorder %s14, 1
    %p100 = scmp.ne.s32.totalorder %s95, %s97
    %p101 = scmp.eq.s32.totalorder %s14, 0
    %p102 = por %p100, %p101
    %p103 = scmp.ne.s32.totalorder %s95, %s97
    %p104 = scmp.eq.s32.totalorder %s19, 1
    %p105 = por %p103, %p104
    %p106 = scmp.ne.s32.totalorder %s97, %s98
    %p107 = scmp.eq.s32.totalorder %s19, 0
    %p108 = por %p106, %p107
    %p109 = scmp.ne.s32.totalorder %s97, %s98
    %p110 = scmp.eq.s32.totalorder %s20, 1
    %p111 = por %p109, %p110
    %p113 = scmp.ne.s32.totalorder %s98, %s112
    %p114 = scmp.eq.s32.totalorder %s20, 0
    %p115 = por %p113, %p114
    %s117 = sadd.s32 %s116, 1
    %p120 = scmp.eq.s32.totalorder %s14, 1
    %p121 = scmp.ne.s32.totalorder %s116, %s118
    %p122 = scmp.eq.s32.totalorder %s14, 0
    %p123 = por %p121, %p122
    %p124 = scmp.ne.s32.totalorder %s116, %s118
    %p125 = scmp.eq.s32.totalorder %s19, 1
    %p126 = por %p124, %p125
    %p127 = scmp.ne.s32.totalorder %s118, %s119
    %p128 = scmp.eq.s32.totalorder %s19, 0
    %p129 = por %p127, %p128
    %p130 = scmp.ne.s32.totalorder %s118, %s119
    %p131 = scmp.eq.s32.totalorder %s20, 1
    %p132 = por %p130, %p131
    %p134 = scmp.ne.s32.totalorder %s119, %s133
    %p135 = scmp.eq.s32.totalorder %s20, 0
    %p136 = por %p134, %p135
    %s138 = sadd.s32 %s137, 1
    %p141 = scmp.eq.s32.totalorder %s14, 1
    %p142 = scmp.ne.s32.totalorder %s137, %s139
    %p143 = scmp.eq.s32.totalorder %s14, 0
    %p144 = por %p142, %p143
    %p145 = scmp.ne.s32.totalorder %s137, %s139
    %p146 = scmp.eq.s32.totalorder %s19, 1
    %p147 = por %p145, %p146
    %p148 = scmp.ne.s32.totalorder %s139, %s140
    %p149 = scmp.eq.s32.totalorder %s19, 0
    %p150 = por %p148, %p149
    %p151 = scmp.ne.s32.totalorder %s139, %s140
    %p152 = scmp.eq.s32.totalorder %s20, 1
    %p153 = por %p151, %p152
    %p155 = scmp.ne.s32.totalorder %s140, %s154
    %p156 = scmp.eq.s32.totalorder %s20, 0
    %p157 = por %p155, %p156
    %s159 = sadd.s32 %s158, 1
    %p162 = scmp.eq.s32.totalorder %s14, 1
    %p163 = scmp.ne.s32.totalorder %s158, %s160
    %p164 = scmp.eq.s32.totalorder %s14, 0
    %p165 = por %p163, %p164
    %p166 = scmp.ne.s32.totalorder %s158, %s160
    %p167 = scmp.eq.s32.totalorder %s19, 1
    %p168 = por %p166, %p167
    %p169 = scmp.ne.s32.totalorder %s160, %s161
    %p170 = scmp.eq.s32.totalorder %s19, 0
    %p171 = por %p169, %p170
    %p172 = scmp.ne.s32.totalorder %s160, %s161
    %p173 = scmp.eq.s32.totalorder %s20, 1
    %p174 = por %p172, %p173
    %p176 = scmp.ne.s32.totalorder %s161, %s175
    %p177 = scmp.eq.s32.totalorder %s20, 0
    %p178 = por %p176, %p177
    %s180 = sadd.s32 %s179, 1
    %p183 = scmp.eq.s32.totalorder %s14, 1
    %p184 = scmp.ne.s32.totalorder %s179, %s181
    %p185 = scmp.eq.s32.totalorder %s14, 0
    %p186 = por %p184, %p185
    %p187 = scmp.ne.s32.totalorder %s179, %s181
    %p188 = scmp.eq.s32.totalorder %s19, 1
    %p189 = por %p187, %p188
    %p190 = scmp.ne.s32.totalorder %s181, %s182
    %p191 = scmp.eq.s32.totalorder %s19, 0
    %p192 = por %p190, %p191
    %p193 = scmp.ne.s32.totalorder %s181, %s182
    %p194 = scmp.eq.s32.totalorder %s20, 1
    %p195 = por %p193, %p194
    %p197 = scmp.ne.s32.totalorder %s182, %s196
    %p198 = scmp.eq.s32.totalorder %s20, 0
    %p199 = por %p197, %p198
    %s200 = ssub.s32 %s14, %s21
    %p201 = scmp.eq.s32.totalorder %s200, 0
    %s203 = sadd.s32 %s202, 1
    %s204 = scalar_select %p201, %s202, %s203
    %p207 = pneg %p201
    %p208 = scmp.eq.s32.totalorder %s14, 1
    %p209 = por %p207, %p208
    %p210 = scmp.ne.s32.totalorder %s202, %s205
    %p211 = scmp.eq.s32.totalorder %s14, 0
    %p212 = por %p210, %p211
    %p213 = scmp.ne.s32.totalorder %s202, %s205
    %p214 = scmp.eq.s32.totalorder %s19, 1
    %p215 = por %p213, %p214
    %p216 = scmp.ne.s32.totalorder %s205, %s206
    %p217 = scmp.eq.s32.totalorder %s19, 0
    %p218 = por %p216, %p217
    %p219 = scmp.ne.s32.totalorder %s205, %s206
    %p220 = scmp.eq.s32.totalorder %s20, 1
    %p221 = por %p219, %p220
    %p223 = scmp.ne.s32.totalorder %s206, %s222
    %p224 = scmp.eq.s32.totalorder %s20, 0
    %p225 = por %p223, %p224
    %p226 = scmp.le.s32.totalorder 1, %s14
    %p227 = scmp.lt.s32.totalorder %s14, 3
    %p228 = pnand %p226, %p227
    %p229 = pneg %p228
    // Predicated region
    $region9: #{user_user_updater_forward.2} parent=5 // pred_check
      _
    $region10: #{user_user_updater_forward.2} parent=5 // pred_check_branch
      %231 = sbr.rel (%p228) target = $region12
    $region11: #{user_user_updater_forward.2} parent=5 // pred_region
      %s232 = ssub.s32 %s14, 1
      // Predicated region
      $region13: #{user_user_updater_forward.2} parent=11 // pred_check
        %p233 = pneg %p87
      $region14: #{user_user_updater_forward.2} parent=11 // pred_check_branch
        %235 = sbr.rel (%p233) target = $region16
      $region15: #{user_user_updater_forward.2} parent=11 // pred_region
        _
      $region16: #{user_user_updater_forward.2} parent=11 // pred_fallthru
        _
      // Predicated region
      $region17: #{user_user_updater_forward.2} parent=11 // pred_check
        %p236 = pneg %p108
      $region18: #{user_user_updater_forward.2} parent=11 // pred_check_branch
        %238 = sbr.rel (%p236) target = $region20
      $region19: #{user_user_updater_forward.2} parent=11 // pred_region
        _
      $region20: #{user_user_updater_forward.2} parent=11 // pred_fallthru
        _
      // Predicated region
      $region21: #{user_user_updater_forward.2} parent=11 // pred_check
        %p239 = pneg %p129
      $region22: #{user_user_updater_forward.2} parent=11 // pred_check_branch
        %241 = sbr.rel (%p239) target = $region24
      $region23: #{user_user_updater_forward.2} parent=11 // pred_region
        _
      $region24: #{user_user_updater_forward.2} parent=11 // pred_fallthru
        _
      // Predicated region
      $region25: #{user_user_updater_forward.2} parent=11 // pred_check
        %p242 = pneg %p150
      $region26: #{user_user_updater_forward.2} parent=11 // pred_check_branch
        %244 = sbr.rel (%p242) target = $region28
      $region27: #{user_user_updater_forward.2} parent=11 // pred_region
        _
      $region28: #{user_user_updater_forward.2} parent=11 // pred_fallthru
        _
      // Predicated region
      $region29: #{user_user_updater_forward.2} parent=11 // pred_check
        %p245 = pneg %p171
      $region30: #{user_user_updater_forward.2} parent=11 // pred_check_branch
        %247 = sbr.rel (%p245) target = $region32
      $region31: #{user_user_updater_forward.2} parent=11 // pred_region
        _
      $region32: #{user_user_updater_forward.2} parent=11 // pred_fallthru
        _
      // Predicated region
      $region33: #{user_user_updater_forward.2} parent=11 // pred_check
        %p248 = pneg %p192
      $region34: #{user_user_updater_forward.2} parent=11 // pred_check_branch
        %250 = sbr.rel (%p248) target = $region36
      $region35: #{user_user_updater_forward.2} parent=11 // pred_region
        _
      $region36: #{user_user_updater_forward.2} parent=11 // pred_fallthru
        _
    $region12: #{user_user_updater_forward.2} parent=5 // pred_fallthru
      _
    %p251 = scmp.lt.s32.totalorder %s14, 2
    // Predicated region
    $region37: #{user_user_updater_forward.2} parent=5 // pred_check
      %p252 = pneg %p251
    $region38: #{user_user_updater_forward.2} parent=5 // pred_check_branch
      %254 = sbr.rel (%p252) target = $region40
    $region39: #{user_user_updater_forward.2} parent=5 // pred_region
      // Predicated region
      $region41: #{user_user_updater_forward.2} parent=39 // pred_check
        %p255 = pneg %p34
      $region42: #{user_user_updater_forward.2} parent=39 // pred_check_branch
        %257 = sbr.rel (%p255) target = $region44
      $region43: #{user_user_updater_forward.2} parent=39 // pred_region
        %p258 = scmp.lt.s32.totalorder %s14, 1
        %s259 = scalar_select %p258, %s14, 1
        %s260 = smul.addr %s259, 8
        %s261 = scalar_lea.vmem %s0, %s260
      $region44: #{user_user_updater_forward.2} parent=39 // pred_fallthru
        _
      // Predicated region
      $region45: #{user_user_updater_forward.2} parent=39 // pred_check
        %p262 = pneg %p60
      $region46: #{user_user_updater_forward.2} parent=39 // pred_check_branch
        %264 = sbr.rel (%p262) target = $region48
      $region47: #{user_user_updater_forward.2} parent=39 // pred_region
        %s265 = smul.u32 4, %s14
        %p266 = scmp.lt.s32.totalorder %s265, 7
        %s267 = scalar_select %p266, %s265, 7
        %s268 = smul.addr %s267, 8
        %s269 = scalar_lea.vmem %s1, %s268
        %s270 = smul.u32 4, %s14
      $region48: #{user_user_updater_forward.2} parent=39 // pred_fallthru
        _
    $region40: #{user_user_updater_forward.2} parent=5 // pred_fallthru
      _
    %p271 = scmp.le.s32.totalorder 1, %s14
    %p272 = scmp.lt.s32.totalorder %s14, 3
    %p273 = pnand %p271, %p272
    %p274 = pneg %p273
    // Predicated region
    $region49: #{user_user_updater_forward.2} parent=5 // pred_check
      _
    $region50: #{user_user_updater_forward.2} parent=5 // pred_check_branch
      %276 = sbr.rel (%p273) target = $region52
    $region51: #{user_user_updater_forward.2} parent=5 // pred_region
      %s277 = ssub.s32 %s14, 1
      %p278 = scmp.lt.s32.totalorder %s19, 1
      %s279 = scalar_select %p278, %s19, 1
      %s280 = smul.addr %s279, 8
      %s281 = scalar_lea.vmem %s0, %s280
      %p282 = pneg %p40
      %p283 = pneg %p37
      %s284 = smul.u32 4, %s19
      %p285 = scmp.lt.s32.totalorder %s284, 7
      %s286 = scalar_select %p285, %s284, 7
      %s287 = smul.addr %s286, 8
      %s288 = scalar_lea.vmem %s1, %s287
      %p289 = pneg %p66
      %p290 = pneg %p63
      %p291 = pneg %p87
      %p292 = pneg %p84
      %p293 = pneg %p108
      %p294 = pneg %p105
      %p295 = pneg %p129
      %p296 = pneg %p126
      %p297 = pneg %p150
      %p298 = pneg %p147
      %p299 = pneg %p171
      %p300 = pneg %p168
      %p301 = pneg %p192
      %p302 = pneg %p189
      %p303 = pneg %p218
      %p304 = pneg %p215
      %s305 = smul.u32 4, %s19
      %p306 = scmp.lt.s32.totalorder %s305, 7
      %s307 = scalar_select %p306, %s305, 7
      %s308 = smul.addr %s307, 4
      %s309 = scalar_lea.vmem %s8, %s308
      %p310 = scmp.lt.s32.totalorder %s19, 1
      %s311 = scalar_select %p310, %s19, 1
      %s312 = smul.addr %s311, 8
      %s313 = scalar_lea.vmem %s0, %s312
      %s314 = smul.u32 4, %s19
      %p315 = scmp.lt.s32.totalorder %s314, 7
      %s316 = scalar_select %p315, %s314, 7
      %s317 = smul.addr %s316, 8
      %s318 = scalar_lea.vmem %s1, %s317
      %s319 = smul.u32 4, %s19
      %s320 = smul.u32 4, %s19
      %p321 = scmp.lt.s32.totalorder %s320, 7
      %s322 = scalar_select %p321, %s320, 7
      %s323 = smul.addr %s322, 4
      %s324 = scalar_lea.vmem %s8, %s323
      %s325 = smul.u32 4, %s19
      %v327 = vld [vmem:[%s313] sm:$0xff]
      %v328 = vunpack.c.l.s8.bf16 %v327
      %v329 = vunpack.c.h.s8.bf16 %v327
      %v330 = vld [vmem:[%s2] sm:$0xf]
      %v331 = vld [vmem:[%s2 + $0x4] sm:$0xf]
      %v332 = vld [vmem:[%s2 + $0x8] sm:$0xf]
      %v333 = vld [vmem:[%s2 + $0xc] sm:$0xf]
      %v334 = vld [vmem:[%s2 + $0x10] sm:$0xf]
      %v335 = vld [vmem:[%s2 + $0x14] sm:$0xf]
      %v336 = vld [vmem:[%s2 + $0x18] sm:$0xf]
      %v337 = vld [vmem:[%s2 + $0x1c] sm:$0xf]
      %v346 = vunpack.c.l.b16 %v330
      %v347 = vunpack.c.l.b16 %v331
      %v348 = vunpack.c.l.b16 %v332
      %v349 = vunpack.c.l.b16 %v333
      %v350 = vunpack.c.l.b16 %v334
      %v351 = vunpack.c.l.b16 %v335
      %v352 = vunpack.c.l.b16 %v336
      %v353 = vunpack.c.l.b16 %v337
      %v354 = vpack.c.b16 %v347, %v346
      %v355 = vpack.c.b16 %v349, %v348
      %v356 = vpack.c.b16 %v351, %v350
      %v357 = vpack.c.b16 %v353, %v352
      %vm362 = vcmask 523264
      %v364 = vsel %vm362, %v328, 0
      %v367 = vsel %vm362, %v329, 0
      %369 = vmatprep.subr.bf16.mxu0 0
      %370 = vmatpush1.bf16.msra.mxu0 0
      %371 = vmatprep.subr.bf16.mxu0 0
      %372 = vmatpush1.bf16.msra.mxu0 0
      %373 = vmatprep.subr.bf16.mxu0 0
      %374 = vmatpush1.bf16.msra.mxu0 0
      %375 = vmatprep.subr.bf16.mxu0 0
      %376 = vmatpush1.bf16.msra.mxu0 0
      %377 = vmatprep.subr.bf16.mxu0 0
      %378 = vmatpush1.bf16.msra.mxu0 %v357
      %379 = vmatprep.subr.bf16.mxu0 0
      %380 = vmatpush1.bf16.msra.mxu0 %v356
      %381 = vmatprep.subr.bf16.mxu0 0
      %382 = vmatpush1.bf16.msra.mxu0 %v355
      %383 = vmatprep.subr.bf16.mxu0 0
      %384 = vmatpush1.bf16.msra.mxu0 %v354
      %385 = vmatprep.subr.bf16.mxu0 0
      %386 = vmatpush2.bf16.msra.mxu0 0
      %387 = vmatprep.subr.bf16.mxu0 0
      %388 = vmatpush2.bf16.msra.mxu0 0
      %389 = vmatprep.subr.bf16.mxu0 0
      %390 = vmatpush2.bf16.msra.mxu0 0
      %391 = vmatprep.subr.bf16.mxu0 0
      %392 = vmatpush2.bf16.msra.mxu0 0
      %393 = vmatprep.subr.bf16.mxu0 0
      %394 = vmatpush2.bf16.msra.mxu0 0
      %395 = vmatprep.subr.bf16.mxu0 0
      %396 = vmatpush2.bf16.msra.mxu0 0
      %397 = vmatprep.subr.bf16.mxu0 0
      %398 = vmatpush2.bf16.msra.mxu0 0
      %399 = vmatprep.subr.bf16.mxu0 0
      %400 = vmatpush2.bf16.msra.mxu0 0
      %401 = vmatprep.mubr.bf16.mxu0 0
      %402 = vmatmul.mubr.bf16.gmra.mxu0 %v364
      %v403 = vpop.f32.mrf.mxu0
      %v404 = vadd.f32 0.0, %v403
      %v405 = vpop.f32.mrf.mxu0
      %v406 = vpop.f32.mrf.mxu0
      %v407 = vadd.f32 0.0, %v406
      %v408 = vpop.f32.mrf.mxu0
      %409 = vmatprep.mubr.bf16.mxu0 0
      %410 = vmatmul.mubr.bf16.gmra.mxu0 %v367
      %v411 = vpop.f32.mrf.mxu0
      %v412 = vadd.f32 0.0, %v411
      %v413 = vpop.f32.mrf.mxu0
      %v414 = vpop.f32.mrf.mxu0
      %v415 = vadd.f32 0.0, %v414
      %v416 = vpop.f32.mrf.mxu0
      %417 = vdwg.mxu0
      %v418 = vld [vmem:[%s318] sm:$0xff]
      %v419 = vld [vmem:[%s318 + $0x8] sm:$0xff]
      %v420 = vld [vmem:[%s318 + $0x10] sm:$0xff]
      %v421 = vld [vmem:[%s318 + $0x18] sm:$0xff]
      %423 = vset.pattern.permute.xlu0 0
      %424 = vperm.xlu0 %423, %v418
      %v425 = vpop.permute.xlu0 %424
      %428 = vset.pattern.permute.xlu0 0
      %429 = vperm.xlu0 %428, %v419
      %v430 = vpop.permute.xlu0 %429
      %433 = vset.pattern.permute.xlu0 0
      %434 = vperm.xlu0 %433, %v420
      %v435 = vpop.permute.xlu0 %434
      %438 = vset.pattern.permute.xlu0 0
      %439 = vperm.xlu0 %438, %v421
      %v440 = vpop.permute.xlu0 %439
      %v442 = vmul.f32 %v404, %v425
      %v443 = vmul.f32 %v407, %v430
      %v444 = vmul.f32 %v412, %v435
      %v445 = vmul.f32 %v415, %v440
      %s446 = smul.u32 %s19, 32
      %s447 = sshra.s32 %s446, 3
      %s448 = sand.u32 %s446, 7
      %s449 = smul.addr %s447, 4
      %s450 = scalar_lea.vmem %s2, %s449
      %v451 = vld [vmem:[%s450] sm:$0xf]
      %v452 = vld [vmem:[%s450 + $0x4] sm:$0xf]
      %v453 = vld [vmem:[%s450 + $0x8] sm:$0xf]
      %v454 = vld [vmem:[%s450 + $0xc] sm:$0xf]
      %v455 = vld [vmem:[%s3] sm:$0xf]
      %v456 = vld [vmem:[%s3 + $0x4] sm:$0xf]
      %v457 = vld [vmem:[%s3 + $0x8] sm:$0xf]
      %v458 = vld [vmem:[%s3 + $0xc] sm:$0xf]
      %v459 = vpack.c.bf16 %v443, %v442
      %v460 = vpack.c.bf16 %v445, %v444
      %v461 = vld [vmem:[%s4] sm:$0xf]
      %v462 = vld [vmem:[%s4 + $0x4] sm:$0xf]
      %v463 = vld [vmem:[%s4 + $0x8] sm:$0xf]
      %v464 = vld [vmem:[%s4 + $0xc] sm:$0xf]
      %v469 = vunpack.c.l.b16 %v461
      %v470 = vunpack.c.l.b16 %v462
      %v471 = vunpack.c.l.b16 %v463
      %v472 = vunpack.c.l.b16 %v464
      %v473 = vpack.c.b16 %v470, %v469
      %v474 = vpack.c.b16 %v472, %v471
      %vm477 = vcmask 261120
      %v479 = vsel %vm477, %v459, 0
      %v482 = vsel %vm477, %v460, 0
      %484 = vmatprep.subr.bf16.mxu0 0
      %485 = vmatpush1.bf16.msra.mxu0 0
      %486 = vmatprep.subr.bf16.mxu0 0
      %487 = vmatpush1.bf16.msra.mxu0 0
      %488 = vmatprep.subr.bf16.mxu0 0
      %489 = vmatpush1.bf16.msra.mxu0 0
      %490 = vmatprep.subr.bf16.mxu0 0
      %491 = vmatpush1.bf16.msra.mxu0 0
      %492 = vmatprep.subr.bf16.mxu0 0
      %493 = vmatpush1.bf16.msra.mxu0 0
      %494 = vmatprep.subr.bf16.mxu0 0
      %495 = vmatpush1.bf16.msra.mxu0 0
      %496 = vmatprep.subr.bf16.mxu0 0
      %497 = vmatpush1.bf16.msra.mxu0 %v474
      %498 = vmatprep.subr.bf16.mxu0 0
      %499 = vmatpush1.bf16.msra.mxu0 %v473
      %500 = vmatprep.subr.bf16.mxu0 0
      %501 = vmatpush2.bf16.msra.mxu0 0
      %502 = vmatprep.subr.bf16.mxu0 0
      %503 = vmatpush2.bf16.msra.mxu0 0
      %504 = vmatprep.subr.bf16.mxu0 0
      %505 = vmatpush2.bf16.msra.mxu0 0
      %506 = vmatprep.subr.bf16.mxu0 0
      %507 = vmatpush2.bf16.msra.mxu0 0
      %508 = vmatprep.subr.bf16.mxu0 0
      %509 = vmatpush2.bf16.msra.mxu0 0
      %510 = vmatprep.subr.bf16.mxu0 0
      %511 = vmatpush2.bf16.msra.mxu0 0
      %512 = vmatprep.subr.bf16.mxu0 0
      %513 = vmatpush2.bf16.msra.mxu0 0
      %514 = vmatprep.subr.bf16.mxu0 0
      %515 = vmatpush2.bf16.msra.mxu0 0
      %516 = vmatprep.mubr.bf16.mxu0 0
      %517 = vmatmul.mubr.bf16.gmra.mxu0 %v479
      %v518 = vpop.f32.mrf.mxu0
      %v519 = vadd.f32 0.0, %v518
      %v520 = vpop.f32.mrf.mxu0
      %v521 = vpop.f32.mrf.mxu0
      %v522 = vadd.f32 0.0, %v521
      %v523 = vpop.f32.mrf.mxu0
      %524 = vmatprep.mubr.bf16.mxu0 0
      %525 = vmatmul.mubr.bf16.gmra.mxu0 %v482
      %v526 = vpop.f32.mrf.mxu0
      %v527 = vadd.f32 0.0, %v526
      %v528 = vpop.f32.mrf.mxu0
      %v529 = vpop.f32.mrf.mxu0
      %v530 = vadd.f32 0.0, %v529
      %v531 = vpop.f32.mrf.mxu0
      %532 = vdwg.mxu0
      %v537 = vunpack.c.l.b16 %v451
      %v538 = vunpack.c.l.b16 %v452
      %v539 = vunpack.c.l.b16 %v453
      %v540 = vunpack.c.l.b16 %v454
      %v541 = vpack.c.b16 %v538, %v537
      %v542 = vpack.c.b16 %v540, %v539
      %v547 = vunpack.c.l.b16 %v455
      %v548 = vunpack.c.l.b16 %v456
      %v549 = vunpack.c.l.b16 %v457
      %v550 = vunpack.c.l.b16 %v458
      %v551 = vpack.c.b16 %v548, %v547
      %v552 = vpack.c.b16 %v550, %v549
      %v556 = vsel %vm477, %v541, 0
      %v559 = vsel %vm477, %v542, 0
      %561 = vmatprep.subr.bf16.mxu0 0
      %562 = vmatpush1.bf16.msra.mxu0 0
      %563 = vmatprep.subr.bf16.mxu0 0
      %564 = vmatpush1.bf16.msra.mxu0 0
      %565 = vmatprep.subr.bf16.mxu0 0
      %566 = vmatpush1.bf16.msra.mxu0 0
      %567 = vmatprep.subr.bf16.mxu0 0
      %568 = vmatpush1.bf16.msra.mxu0 0
      %569 = vmatprep.subr.bf16.mxu0 0
      %570 = vmatpush1.bf16.msra.mxu0 0
      %571 = vmatprep.subr.bf16.mxu0 0
      %572 = vmatpush1.bf16.msra.mxu0 0
      %573 = vmatprep.subr.bf16.mxu0 0
      %574 = vmatpush1.bf16.msra.mxu0 %v552
      %575 = vmatprep.subr.bf16.mxu0 0
      %576 = vmatpush1.bf16.msra.mxu0 %v551
      %577 = vmatprep.subr.bf16.mxu0 0
      %578 = vmatpush2.bf16.msra.mxu0 0
      %579 = vmatprep.subr.bf16.mxu0 0
      %580 = vmatpush2.bf16.msra.mxu0 0
      %581 = vmatprep.subr.bf16.mxu0 0
      %582 = vmatpush2.bf16.msra.mxu0 0
      %583 = vmatprep.subr.bf16.mxu0 0
      %584 = vmatpush2.bf16.msra.mxu0 0
      %585 = vmatprep.subr.bf16.mxu0 0
      %586 = vmatpush2.bf16.msra.mxu0 0
      %587 = vmatprep.subr.bf16.mxu0 0
      %588 = vmatpush2.bf16.msra.mxu0 0
      %589 = vmatprep.subr.bf16.mxu0 0
      %590 = vmatpush2.bf16.msra.mxu0 0
      %591 = vmatprep.subr.bf16.mxu0 0
      %592 = vmatpush2.bf16.msra.mxu0 0
      %593 = vmatprep.mubr.bf16.mxu0 0
      %594 = vmatmul.mubr.bf16.gmra.mxu0 %v556
      %v595 = vpop.f32.mrf.mxu0
      %v596 = vadd.f32 %v519, %v595
      %v597 = vpop.f32.mrf.mxu0
      %v598 = vpop.f32.mrf.mxu0
      %v599 = vadd.f32 %v522, %v598
      %v600 = vpop.f32.mrf.mxu0
      %601 = vmatprep.mubr.bf16.mxu0 0
      %602 = vmatmul.mubr.bf16.gmra.mxu0 %v559
      %v603 = vpop.f32.mrf.mxu0
      %v604 = vadd.f32 %v527, %v603
      %v605 = vpop.f32.mrf.mxu0
      %v606 = vpop.f32.mrf.mxu0
      %v607 = vadd.f32 %v530, %v606
      %v608 = vpop.f32.mrf.mxu0
      %609 = vdwg.mxu0
      %v610 = vld [vmem:[%s5] sm:$0x1]
      %v612 = vlaneseq
      %v613 = vshrl.u32 %v612, 7
      %v614 = vsub.s32 0, %v613
      %v615 = vrot.slane %v610, %v614
      %v617 = vadd.f32 %v596, %v615
      %v618 = vadd.f32 %v599, %v615
      %v619 = vadd.f32 %v604, %v615
      %v620 = vadd.f32 %v607, %v615
      %v621 = vmax.f32 %v617, 0.0
      %v622 = vmax.f32 %v618, 0.0
      %v623 = vmax.f32 %v619, 0.0
      %v624 = vmax.f32 %v620, 0.0
      %v625 = vpack.c.bf16 %v622, %v621
      %v626 = vpack.c.bf16 %v624, %v623
      %v627 = vld [vmem:[%s6] sm:$0xf]
      %v628 = vld [vmem:[%s6 + $0x4] sm:$0xf]
      %v629 = vld [vmem:[%s6 + $0x8] sm:$0xf]
      %v630 = vld [vmem:[%s6 + $0xc] sm:$0xf]
      %v631 = vld [vmem:[%s7] sm:$0x1]
      %v633 = vlaneseq
      %v634 = vshrl.u32 %v633, 7
      %v635 = vsub.s32 0, %v634
      %v636 = vrot.slane %v631, %v635
      %v642 = vunpack.c.l.b16 %v627
      %v643 = vunpack.c.l.b16 %v628
      %v644 = vunpack.c.l.b16 %v629
      %v645 = vunpack.c.l.b16 %v630
      %v646 = vpack.c.b16 %v643, %v642
      %v647 = vpack.c.b16 %v645, %v644
      %v651 = vsel %vm477, %v625, 0
      %v654 = vsel %vm477, %v626, 0
      %656 = vmatprep.subr.bf16.mxu0 0
      %657 = vmatpush1.bf16.msra.mxu0 0
      %658 = vmatprep.subr.bf16.mxu0 0
      %659 = vmatpush1.bf16.msra.mxu0 0
      %660 = vmatprep.subr.bf16.mxu0 0
      %661 = vmatpush1.bf16.msra.mxu0 0
      %662 = vmatprep.subr.bf16.mxu0 0
      %663 = vmatpush1.bf16.msra.mxu0 0
      %664 = vmatprep.subr.bf16.mxu0 0
      %665 = vmatpush1.bf16.msra.mxu0 0
      %666 = vmatprep.subr.bf16.mxu0 0
      %667 = vmatpush1.bf16.msra.mxu0 0
      %668 = vmatprep.subr.bf16.mxu0 0
      %669 = vmatpush1.bf16.msra.mxu0 %v647
      %670 = vmatprep.subr.bf16.mxu0 0
      %671 = vmatpush1.bf16.msra.mxu0 %v646
      %672 = vmatprep.subr.bf16.mxu0 0
      %673 = vmatpush2.bf16.msra.mxu0 0
      %674 = vmatprep.subr.bf16.mxu0 0
      %675 = vmatpush2.bf16.msra.mxu0 0
      %676 = vmatprep.subr.bf16.mxu0 0
      %677 = vmatpush2.bf16.msra.mxu0 0
      %678 = vmatprep.subr.bf16.mxu0 0
      %679 = vmatpush2.bf16.msra.mxu0 0
      %680 = vmatprep.subr.bf16.mxu0 0
      %681 = vmatpush2.bf16.msra.mxu0 0
      %682 = vmatprep.subr.bf16.mxu0 0
      %683 = vmatpush2.bf16.msra.mxu0 0
      %684 = vmatprep.subr.bf16.mxu0 0
      %685 = vmatpush2.bf16.msra.mxu0 0
      %686 = vmatprep.subr.bf16.mxu0 0
      %687 = vmatpush2.bf16.msra.mxu0 0
      %688 = vmatprep.mubr.bf16.mxu0 0
      %689 = vmatmul.mubr.bf16.gmra.mxu0 %v651
      %v690 = vpop.f32.mrf.mxu0
      %v691 = vadd.f32 %v636, %v690
      %v692 = vpop.f32.mrf.mxu0
      %v693 = vpop.f32.mrf.mxu0
      %v694 = vadd.f32 %v636, %v693
      %v695 = vpop.f32.mrf.mxu0
      %696 = vmatprep.mubr.bf16.mxu0 0
      %697 = vmatmul.mubr.bf16.gmra.mxu0 %v654
      %v698 = vpop.f32.mrf.mxu0
      %v699 = vadd.f32 %v636, %v698
      %v700 = vpop.f32.mrf.mxu0
      %v701 = vpop.f32.mrf.mxu0
      %v702 = vadd.f32 %v636, %v701
      %v703 = vpop.f32.mrf.mxu0
      %704 = vdwg.mxu0
      %v705 = vmax.f32 %v691, 0.0
      %v706 = vmax.f32 %v694, 0.0
      %v707 = vmax.f32 %v699, 0.0
      %v708 = vmax.f32 %v702, 0.0
      %v709 = vpack.c.bf16 %v706, %v705
      %v710 = vpack.c.bf16 %v708, %v707
      %v713 = vunpack.c.l.b16 %v709
      %v714 = vunpack.c.h.b16 %v709
      %v715 = vunpack.c.l.b16 %v710
      %v716 = vunpack.c.h.b16 %v710
      %v717 = vpack.c.b16 %v713, %v713
      %v718 = vpack.c.b16 %v714, %v714
      %v719 = vpack.c.b16 %v715, %v715
      %v720 = vpack.c.b16 %v716, %v716
      %vm725 = vcmask 257024
      %726 = vst.msk [vmem:[%s324] sm:$0xf] %vm725, %v717
      %727 = vst.msk [vmem:[%s324 + $0x4] sm:$0xf] %vm725, %v718
      %728 = vst.msk [vmem:[%s324 + $0x8] sm:$0xf] %vm725, %v719
      %729 = vst.msk [vmem:[%s324 + $0xc] sm:$0xf] %vm725, %v720
      %s730 = smul.u32 4, %s19
      %p731 = scmp.lt.s32.totalorder %s730, 7
      %s732 = scalar_select %p731, %s730, 7
      %s733 = smul.addr %s732, 4
      %s734 = scalar_lea.vmem %s8, %s733
      // Predicated region
      $region53: #{user_user_updater_forward.2} parent=51 // pred_check
        %p735 = pneg %p215
      $region54: #{user_user_updater_forward.2} parent=51 // pred_check_branch
        %737 = sbr.rel (%p735) target = $region56
      $region55: #{user_user_updater_forward.2} parent=51 // pred_region
        %s738 = smul.u32 4, %s19
      $region56: #{user_user_updater_forward.2} parent=51 // pred_fallthru
        _
    $region52: #{user_user_updater_forward.2} parent=5 // pred_fallthru
      _
    %p739 = scmp.le.s32.totalorder 2, %s14
    // Predicated region
    $region57: #{user_user_updater_forward.2} parent=5 // pred_check
      %p740 = pneg %p739
    $region58: #{user_user_updater_forward.2} parent=5 // pred_check_branch
      %742 = sbr.rel (%p740) target = $region60
    $region59: #{user_user_updater_forward.2} parent=5 // pred_region
      %s743 = ssub.s32 %s14, 2
      // Predicated region
      $region61: #{user_user_updater_forward.2} parent=59 // pred_check
        %p744 = pneg %p221
      $region62: #{user_user_updater_forward.2} parent=59 // pred_check_branch
        %746 = sbr.rel (%p744) target = $region64
      $region63: #{user_user_updater_forward.2} parent=59 // pred_region
        %s747 = smul.u32 4, %s20
        %p748 = scmp.lt.s32.totalorder %s747, 7
        %s749 = scalar_select %p748, %s747, 7
        %s750 = smul.addr %s749, 4
        %s751 = scalar_lea.vmem %s8, %s750
      $region64: #{user_user_updater_forward.2} parent=59 // pred_fallthru
        _
    $region60: #{user_user_updater_forward.2} parent=5 // pred_fallthru
      _
  $region6: #{user_user_updater_forward.2} parent=0 // loop_footer
    %s18 = sadd.s32 1, %s14
  $region7: #{user_user_updater_forward.2} parent=0 // loop_footer_branch
    %13 = sbr.rel target = $region3
  $region8: #{user_user_updater_forward.2} parent=0 // loop_exit
    _

</llo_original>
